<compile_context>
chip_gen: v5e
topology: v5e:2x2
jax: 0.10.0
libtpu: 0.0.40
codegen_flags: <defaults>
</compile_context>

<pallas_src>
import jax
import jax.numpy as jnp
from jax.experimental import pallas as pl
from jax.experimental.pallas import tpu as pltpu


def _round_up(x, m):
    return (x + m - 1) // m * m


def vae_decoder_kernel(z_ref, w1_ref, b1_ref, w2_ref, b2_ref, out_ref):
    # h = relu(z @ W1 + b1), accumulated in f32, elementwise in f32.
    h = jnp.dot(z_ref[...], w1_ref[...], preferred_element_type=jnp.float32)
    h = jnp.maximum(h + b1_ref[...], 0.0)
    # x_recon = sigmoid(h @ W2 + b2)
    y = jnp.dot(h.astype(w2_ref.dtype), w2_ref[...],
                preferred_element_type=jnp.float32)
    y = jax.nn.sigmoid(y + b2_ref[...])
    out_ref[...] = y.astype(out_ref.dtype)


def vae_decoder(z, w1, b1, w2, b2, *, batch_tile=256, compute_dtype=None):
    """VAE decoder forward pass. z:(B,L), w1:(L,H), b1:(1,H), w2:(H,O), b2:(1,O).

    Returns x_recon of shape (B, O) in z.dtype.
    """
    B, latent_dim = z.shape
    hidden_dim = w1.shape[1]
    output_dim = w2.shape[1]
    out_dtype = z.dtype

    # ---- lane-dense padding of feature dims (multiple of 128) -------------
    Hp = _round_up(hidden_dim, 128)
    Op = _round_up(output_dim, 128)

    w1_p = jnp.pad(w1, ((0, 0), (0, Hp - hidden_dim)))
    b1_p = jnp.pad(b1, ((0, 0), (0, Hp - hidden_dim)))
    w2_p = jnp.pad(w2, ((0, Hp - hidden_dim), (0, Op - output_dim)))
    b2_p = jnp.pad(b2, ((0, 0), (0, Op - output_dim)))

    # ---- batch tiling ------------------------------------------------------
    bt = min(batch_tile, _round_up(B, 8))
    bt = _round_up(bt, 8)
    Bp = _round_up(B, bt)
    z_p = jnp.pad(z, ((0, Bp - B), (0, 0)))

    # ---- optional low-precision MXU inputs (f32 accumulation kept) --------
    cd = compute_dtype if compute_dtype is not None else z.dtype
    z_p = z_p.astype(cd)
    w1_p = w1_p.astype(cd)
    w2_p = w2_p.astype(cd)
    b1_p = b1_p.astype(jnp.float32)
    b2_p = b2_p.astype(jnp.float32)

    grid = (Bp // bt,)

    in_specs = [
        pl.BlockSpec((bt, latent_dim), lambda i: (i, 0)),      # z tile (streams)
        pl.BlockSpec((latent_dim, Hp), lambda i: (0, 0)),      # W1 (resident)
        pl.BlockSpec((1, Hp), lambda i: (0, 0)),               # b1
        pl.BlockSpec((Hp, Op), lambda i: (0, 0)),              # W2 (resident)
        pl.BlockSpec((1, Op), lambda i: (0, 0)),               # b2
    ]
    out_specs = pl.BlockSpec((bt, Op), lambda i: (i, 0))
    out_shape = jax.ShapeDtypeStruct((Bp, Op), out_dtype)

    # ---- scheduling hints --------------------------------------------------
    in_item = jnp.dtype(cd).itemsize
    out_item = jnp.dtype(out_dtype).itemsize
    flops = 2 * Bp * latent_dim * Hp + 2 * Bp * Hp * Op
    transcendentals = Bp * Op  # sigmoid
    bytes_accessed = (Bp * latent_dim * in_item
                      + latent_dim * Hp * in_item + Hp * 4
                      + Hp * Op * in_item + Op * 4
                      + Bp * Op * out_item)
    cost = pl.CostEstimate(flops=flops, transcendentals=transcendentals,
                           bytes_accessed=bytes_accessed)

    # Per-tile VMEM footprint (double-buffered blocks) with headroom, clamped
    # so it also fits v7x's smaller (64 MiB) VMEM.
    block_bytes = (bt * latent_dim * in_item
                   + latent_dim * Hp * in_item + Hp * 4
                   + Hp * Op * in_item + Op * 4
                   + bt * Op * out_item)
    vmem_limit = int(min(max(4 * block_bytes, 16 * 1024 * 1024),
                         48 * 1024 * 1024))

    x_recon_padded = pl.pallas_call(
        vae_decoder_kernel,
        grid=grid,
        in_specs=in_specs,
        out_specs=out_specs,
        out_shape=out_shape,
        compiler_params=pltpu.CompilerParams(
            dimension_semantics=("parallel",),
            vmem_limit_bytes=vmem_limit),
        cost_estimate=cost,
    )(z_p, w1_p, b1_p, w2_p, b2_p)

    return x_recon_padded[:B, :output_dim]


def _init_linear(key, in_features, out_features, dtype=jnp.float32):
    """Deterministic init mimicking nn.Linear's uniform(-1/sqrt(in), 1/sqrt(in)).
    Returns (W of shape (in, out), b of shape (1, out))."""
    kw, kb = jax.random.split(key)
    bound = 1.0 / jnp.sqrt(in_features)
    w = jax.random.uniform(kw, (in_features, out_features), dtype,
                           minval=-bound, maxval=bound)
    b = jax.random.uniform(kb, (1, out_features), dtype,
                           minval=-bound, maxval=bound)
    return w, b


if __name__ == "__main__":
    # Small shapes consistent with the module: z: (batch, latent_dim)
    batch, latent_dim, hidden_dim, output_dim = 8, 16, 64, 32

    key = jax.random.PRNGKey(0)
    kz, k1, k2 = jax.random.split(key, 3)

    z = jax.random.normal(kz, (batch, latent_dim), jnp.float32)
    w1, b1 = _init_linear(k1, latent_dim, hidden_dim)
    w2, b2 = _init_linear(k2, hidden_dim, output_dim)

    x_recon = vae_decoder(z, w1, b1, w2, b2)
    jax.block_until_ready(x_recon)

    # Pure-JAX reference of the same math (fc1 -> relu -> fc2 -> sigmoid).
    h_ref = jnp.maximum(z @ w1 + b1, 0.0)
    x_ref = jax.nn.sigmoid(h_ref @ w2 + b2)

    assert x_recon.shape == (batch, output_dim)
    assert jnp.allclose(x_recon, x_ref, atol=1e-5, rtol=1e-5)

    print("KERNEL_OK")
</pallas_src>

<mosaic_0001>
module attributes {stable_mosaic.version = 11 : i64} {
  func.func @vae_decoder_kernel(%arg0: i32, %arg1: memref<8x16xf32, #tpu.memory_space<vmem>>, %arg2: memref<16x128xf32, #tpu.memory_space<vmem>>, %arg3: memref<1x128xf32, #tpu.memory_space<vmem>>, %arg4: memref<128x128xf32, #tpu.memory_space<vmem>>, %arg5: memref<1x128xf32, #tpu.memory_space<vmem>>, %arg6: memref<8x128xf32, #tpu.memory_space<vmem>>) attributes {dimension_semantics = [#tpu.dimension_semantics<parallel>], iteration_bounds = array<i64: 1>, scalar_prefetch = 0 : i64, scratch_operands = 0 : i64, tpu.core_type = #tpu.core_type<tc>, window_params = [{transform_indices = @transform_0, window_bounds = array<i64: 8, 16>}, {pipeline_mode = #tpu.pipeline_mode<synchronous>, transform_indices = @transform_1, window_bounds = array<i64: 16, 128>}, {pipeline_mode = #tpu.pipeline_mode<synchronous>, transform_indices = @transform_2, window_bounds = array<i64: 1, 128>}, {pipeline_mode = #tpu.pipeline_mode<synchronous>, transform_indices = @transform_3, window_bounds = array<i64: 128, 128>}, {pipeline_mode = #tpu.pipeline_mode<synchronous>, transform_indices = @transform_4, window_bounds = array<i64: 1, 128>}, {transform_indices = @transform_5, window_bounds = array<i64: 8, 128>}]} {
    %c0 = arith.constant 0 : index
    %c0_0 = arith.constant 0 : index
    %0 = vector.load %arg1[%c0, %c0_0] : memref<8x16xf32, #tpu.memory_space<vmem>>, vector<8x16xf32>
    %c0_1 = arith.constant 0 : index
    %c0_2 = arith.constant 0 : index
    %1 = vector.load %arg2[%c0_1, %c0_2] : memref<16x128xf32, #tpu.memory_space<vmem>>, vector<16x128xf32>
    %cst = arith.constant dense<0.000000e+00> : vector<8x128xf32>
    %2 = tpu.matmul %0, %1, %cst {dimension_numbers = #tpu.dot_dimension_numbers<[1], [0], [0], [1], [0, 0, 1, 1], [], []>} : vector<8x16xf32>, vector<16x128xf32>, vector<8x128xf32> -> vector<8x128xf32>
    %c0_3 = arith.constant 0 : index
    %c0_4 = arith.constant 0 : index
    %3 = vector.load %arg3[%c0_3, %c0_4] : memref<1x128xf32, #tpu.memory_space<vmem>>, vector<1x128xf32>
    %4 = vector.broadcast %3 : vector<1x128xf32> to vector<8x128xf32>
    %5 = arith.addf %2, %4 : vector<8x128xf32>
    %cst_5 = arith.constant 0.000000e+00 : f32
    %6 = vector.broadcast %cst_5 : f32 to vector<8x128xf32>
    %7 = arith.maximumf %5, %6 : vector<8x128xf32>
    %c0_6 = arith.constant 0 : index
    %c0_7 = arith.constant 0 : index
    %8 = vector.load %arg4[%c0_6, %c0_7] : memref<128x128xf32, #tpu.memory_space<vmem>>, vector<128x128xf32>
    %cst_8 = arith.constant dense<0.000000e+00> : vector<8x128xf32>
    %9 = tpu.matmul %7, %8, %cst_8 {dimension_numbers = #tpu.dot_dimension_numbers<[1], [0], [0], [1], [0, 0, 1, 1], [], []>} : vector<8x128xf32>, vector<128x128xf32>, vector<8x128xf32> -> vector<8x128xf32>
    %c0_9 = arith.constant 0 : index
    %c0_10 = arith.constant 0 : index
    %10 = vector.load %arg5[%c0_9, %c0_10] : memref<1x128xf32, #tpu.memory_space<vmem>>, vector<1x128xf32>
    %11 = vector.broadcast %10 : vector<1x128xf32> to vector<8x128xf32>
    %12 = arith.addf %9, %11 : vector<8x128xf32>
    %13 = arith.negf %12 : vector<8x128xf32>
    %14 = math.exp %13 : vector<8x128xf32>
    %cst_11 = arith.constant 1.000000e+00 : f32
    %15 = vector.broadcast %cst_11 : f32 to vector<8x128xf32>
    %16 = arith.addf %15, %14 : vector<8x128xf32>
    %17 = arith.divf %15, %16 : vector<8x128xf32>
    %c0_12 = arith.constant 0 : index
    %c0_13 = arith.constant 0 : index
    %18 = vector.load %arg6[%c0_12, %c0_13] : memref<8x128xf32, #tpu.memory_space<vmem>>, vector<8x128xf32>
    tpu.vector_store %arg6[%c0_12, %c0_13], %17 {strides = array<i32>} : memref<8x128xf32, #tpu.memory_space<vmem>>, vector<8x128xf32>,
    return
  }
  func.func @transform_0(%arg0: i32) -> (i32, i32) {
    %c0_i32 = arith.constant 0 : i32
    %c0_i32_0 = arith.constant 0 : i32
    return %arg0, %c0_i32 : i32, i32
  }
  func.func @transform_1(%arg0: i32) -> (i32, i32) {
    %c0_i32 = arith.constant 0 : i32
    %c0_i32_0 = arith.constant 0 : i32
    %c0_i32_1 = arith.constant 0 : i32
    return %c0_i32, %c0_i32_0 : i32, i32
  }
  func.func @transform_2(%arg0: i32) -> (i32, i32) {
    %c0_i32 = arith.constant 0 : i32
    %c0_i32_0 = arith.constant 0 : i32
    %c0_i32_1 = arith.constant 0 : i32
    return %c0_i32, %c0_i32_0 : i32, i32
  }
  func.func @transform_3(%arg0: i32) -> (i32, i32) {
    %c0_i32 = arith.constant 0 : i32
    %c0_i32_0 = arith.constant 0 : i32
    %c0_i32_1 = arith.constant 0 : i32
    return %c0_i32, %c0_i32_0 : i32, i32
  }
  func.func @transform_4(%arg0: i32) -> (i32, i32) {
    %c0_i32 = arith.constant 0 : i32
    %c0_i32_0 = arith.constant 0 : i32
    %c0_i32_1 = arith.constant 0 : i32
    return %c0_i32, %c0_i32_0 : i32, i32
  }
  func.func @transform_5(%arg0: i32) -> (i32, i32) {
    %c0_i32 = arith.constant 0 : i32
    %c0_i32_0 = arith.constant 0 : i32
    return %arg0, %c0_i32 : i32, i32
  }
}

</mosaic_0001>

<llo_original>
// kernel: tpu_custom_call.1
$region0: #{tpu_custom_call.1}
  #allocation0 [shape = 'u32[]', space=smem, size = 0x4, offset = 0x4, fixed_abs, tag = 'smem constant byte address 0x4 - core index']
  #allocation1 [shape = 'u32[72,128]{1,0:T(1,128)}', space=vmem, size = 0x9000, scoped, tag = 'internal scratch']
  %s0 = inlined_call_operand.hbm [shape: f32[8,16], index: 0, kind: input, shape index: {}]
  %s1 = inlined_call_operand.hbm [shape: f32[16,128], index: 1, kind: input, shape index: {}]
  %s2 = inlined_call_operand.vmem [shape: f32[1,128], index: 2, kind: input, shape index: {}]
  %s3 = inlined_call_operand.hbm [shape: f32[128,128], index: 3, kind: input, shape index: {}]
  %s4 = inlined_call_operand.vmem [shape: f32[1,128], index: 4, kind: input, shape index: {}]
  %s5 = inlined_call_operand.hbm [shape: f32[8,128], index: 5, kind: output, shape index: {}]
  %s6 = sld [smem:[#allocation0]]
  $region42: #{tpu_custom_call.1} parent=0
    _
  %s8 = ssub.s32 1, %s6
  %s9 = scalar_select 0, %s8, %s6
  $region1: #{tpu_custom_call.1} parent=0
    #allocation2 [shape = 'u8[4096]{0}', space=vmem, size = 0x1000, scoped, tag = 'input window, operand 0, single buffered']
    #allocation3 [shape = 's32[1]{0}', space=sflag, size = 0x4, scoped, tag = 'scoped memory for tpu_custom_call.1']
    #allocation4 [shape = 's32[1]{0}', space=sflag, size = 0x4, scoped, tag = 'scoped memory for tpu_custom_call.1']
    #allocation5 [shape = 'u8[8192]{0}', space=vmem, size = 0x2000, scoped, tag = 'input window, operand 1, single buffered']
    #allocation6 [shape = 's32[1]{0}', space=sflag, size = 0x4, scoped, tag = 'scoped memory for tpu_custom_call.1']
    #allocation7 [shape = 'u8[65536]{0}', space=vmem, size = 0x10000, scoped, tag = 'input window, operand 3, single buffered']
    #allocation8 [shape = 'u8[4096]{0}', space=vmem, size = 0x1000, scoped, tag = 'output window, operand 0, single buffered']
    %10 = vsyncpa [#allocation3], 0
    %11 = vsyncpa [#allocation6], 0
    %12 = vsyncpa [#allocation4], 0
    // Predicated region
    $region2: #{tpu_custom_call.1} parent=1 // pred_check
      _
    $region3: #{tpu_custom_call.1} parent=1 // pred_check_branch
      %14 = sbr.rel (0) target = $region5
    $region4: #{tpu_custom_call.1} parent=1 // pred_region
      %16 = vsyncadd [#allocation3], 0
      %s18 = sshll.u32 %s0, 4
      %s19 = int_to_ptr.hbm [resolvable:$true] %s18
      %s20 = sshll.u32 [#allocation2], 4
      %s21 = int_to_ptr.vmem [resolvable:$true] %s20
      %23 = dma.hbm_to_vmem [thread:$0]  %s19, 128, %s21, [#allocation3]
    $region5: #{tpu_custom_call.1} parent=1 // pred_fallthru
      _
    // Predicated region
    $region6: #{tpu_custom_call.1} parent=1 // pred_check
      _
    $region7: #{tpu_custom_call.1} parent=1 // pred_check_branch
      %25 = sbr.rel (0) target = $region9
    $region8: #{tpu_custom_call.1} parent=1 // pred_region
      %27 = vsyncadd [#allocation6], 0
      %s28 = sshll.u32 %s1, 4
      %s29 = int_to_ptr.hbm [resolvable:$true] %s28
      %s30 = sshll.u32 [#allocation5], 4
      %s31 = int_to_ptr.vmem [resolvable:$true] %s30
      %36 = dma.hbm_to_vmem [thread:$0]  %s29, 256, %s31, [#allocation6], 128, 128, 8
    $region9: #{tpu_custom_call.1} parent=1 // pred_fallthru
      _
    // Predicated region
    $region10: #{tpu_custom_call.1} parent=1 // pred_check
      _
    $region11: #{tpu_custom_call.1} parent=1 // pred_check_branch
      %38 = sbr.rel (0) target = $region13
    $region12: #{tpu_custom_call.1} parent=1 // pred_region
      _
    $region13: #{tpu_custom_call.1} parent=1 // pred_fallthru
      _
    // Predicated region
    $region14: #{tpu_custom_call.1} parent=1 // pred_check
      _
    $region15: #{tpu_custom_call.1} parent=1 // pred_check_branch
      %40 = sbr.rel (0) target = $region17
    $region16: #{tpu_custom_call.1} parent=1 // pred_region
      %42 = vsyncadd [#allocation6], 0
      %s43 = sshll.u32 %s3, 4
      %s44 = int_to_ptr.hbm [resolvable:$true] %s43
      %s45 = sshll.u32 [#allocation7], 4
      %s46 = int_to_ptr.vmem [resolvable:$true] %s45
      %51 = dma.hbm_to_vmem [thread:$0]  %s44, 2048, %s46, [#allocation6], 128, 128, 8
    $region17: #{tpu_custom_call.1} parent=1 // pred_fallthru
      _
    // Predicated region
    $region18: #{tpu_custom_call.1} parent=1 // pred_check
      _
    $region19: #{tpu_custom_call.1} parent=1 // pred_check_branch
      %53 = sbr.rel (0) target = $region21
    $region20: #{tpu_custom_call.1} parent=1 // pred_region
      _
    $region21: #{tpu_custom_call.1} parent=1 // pred_fallthru
      _
    // Predicated region
    $region22: #{tpu_custom_call.1} parent=1 // pred_check
      _
    $region23: #{tpu_custom_call.1} parent=1 // pred_check_branch
      %55 = sbr.rel (0) target = $region25
    $region24: #{tpu_custom_call.1} parent=1 // pred_region
      %57 = dma.done [#allocation3], 128
    $region25: #{tpu_custom_call.1} parent=1 // pred_fallthru
      _
    // Predicated region
    $region26: #{tpu_custom_call.1} parent=1 // pred_check
      _
    $region27: #{tpu_custom_call.1} parent=1 // pred_check_branch
      %59 = sbr.rel (0) target = $region29
    $region28: #{tpu_custom_call.1} parent=1 // pred_region
      %61 = dma.done [#allocation6], 256
    $region29: #{tpu_custom_call.1} parent=1 // pred_fallthru
      _
    // Predicated region
    $region30: #{tpu_custom_call.1} parent=1 // pred_check
      _
    $region31: #{tpu_custom_call.1} parent=1 // pred_check_branch
      %63 = sbr.rel (0) target = $region33
    $region32: #{tpu_custom_call.1} parent=1 // pred_region
      %65 = dma.done [#allocation6], 2048
    $region33: #{tpu_custom_call.1} parent=1 // pred_fallthru
      _
    %v66 = vld [vmem:[#allocation2] sm:$0xff]
    %v67 = vld [vmem:[#allocation5] sm:$0xff]
    %v68 = vld [vmem:[#allocation5 + $0x8] sm:$0xff]
    %v69 = vld [vmem:[%s2] sm:$0x1]
    %v71 = vperm.slane %v69, 0
    %vm73 = vcmask 130048
    %v75 = vsel %vm73, %v66, 0
    %77 = vmatpush.msra.mxu0 0.0
    %78 = vmatpush.msra.mxu0 0.0
    %79 = vmatpush.msra.mxu0 0.0
    %80 = vmatpush.msra.mxu0 0.0
    %81 = vmatpush.msra.mxu0 0.0
    %82 = vmatpush.msra.mxu0 0.0
    %83 = vmatpush.msra.mxu0 0.0
    %84 = vmatpush.msra.mxu0 0.0
    %85 = vmatpush.msra.mxu0 0.0
    %86 = vmatpush.msra.mxu0 0.0
    %87 = vmatpush.msra.mxu0 0.0
    %88 = vmatpush.msra.mxu0 0.0
    %89 = vmatpush.msra.mxu0 0.0
    %90 = vmatpush.msra.mxu0 0.0
    %91 = vmatpush.msra.mxu0 %v68
    %92 = vmatpush.msra.mxu0 %v67
    %93 = vmatmul.f32.gmra.mxu0 %v75
    %v94 = vpop.f32.mrf.mxu0
    %v95 = vadd.f32 %v71, %v94
    %96 = vdwg.mxu0
    %v97 = vmax.f32 %v95, 0.0
    %v98 = vld [vmem:[#allocation7] sm:$0xff]
    %v99 = vld [vmem:[#allocation7 + $0x8] sm:$0xff]
    %v100 = vld [vmem:[#allocation7 + $0x10] sm:$0xff]
    %v101 = vld [vmem:[#allocation7 + $0x18] sm:$0xff]
    %v102 = vld [vmem:[#allocation7 + $0x20] sm:$0xff]
    %v103 = vld [vmem:[#allocation7 + $0x28] sm:$0xff]
    %v104 = vld [vmem:[#allocation7 + $0x30] sm:$0xff]
    %v105 = vld [vmem:[#allocation7 + $0x38] sm:$0xff]
    %v106 = vld [vmem:[#allocation7 + $0x40] sm:$0xff]
    %v107 = vld [vmem:[#allocation7 + $0x48] sm:$0xff]
    %v108 = vld [vmem:[#allocation7 + $0x50] sm:$0xff]
    %v109 = vld [vmem:[#allocation7 + $0x58] sm:$0xff]
    %v110 = vld [vmem:[#allocation7 + $0x60] sm:$0xff]
    %v111 = vld [vmem:[#allocation7 + $0x68] sm:$0xff]
    %v112 = vld [vmem:[#allocation7 + $0x70] sm:$0xff]
    %v113 = vld [vmem:[#allocation7 + $0x78] sm:$0xff]
    %v114 = vld [vmem:[%s4] sm:$0x1]
    %v116 = vperm.slane %v114, 0
    %118 = vmatpush.msra.mxu0 %v113
    %119 = vmatpush.msra.mxu0 %v112
    %120 = vmatpush.msra.mxu0 %v111
    %121 = vmatpush.msra.mxu0 %v110
    %122 = vmatpush.msra.mxu0 %v109
    %123 = vmatpush.msra.mxu0 %v108
    %124 = vmatpush.msra.mxu0 %v107
    %125 = vmatpush.msra.mxu0 %v106
    %126 = vmatpush.msra.mxu0 %v105
    %127 = vmatpush.msra.mxu0 %v104
    %128 = vmatpush.msra.mxu0 %v103
    %129 = vmatpush.msra.mxu0 %v102
    %130 = vmatpush.msra.mxu0 %v101
    %131 = vmatpush.msra.mxu0 %v100
    %132 = vmatpush.msra.mxu0 %v99
    %133 = vmatpush.msra.mxu0 %v98
    %134 = vmatmul.f32.gmra.mxu0 %v97
    %v135 = vpop.f32.mrf.mxu0
    %v136 = vadd.f32 %v116, %v135
    %137 = vdwg.mxu0
    %v138 = vxor.u32 %v136, 2147483648
    %v139 = vmul.f32 %v138, 1.442695
    %v140 = vpow.pop %v139
    %v141 = vadd.f32 %v140, 1.0
    %v142 = vrcp.pop %v141
    %v143 = vmul.f32 %v141, %v142
    %v144 = vsub.f32 1.0, %v143
    %v145 = vmul.f32 %v142, %v144
    %v146 = vadd.f32 %v142, %v145
    %vm147 = vweird.f32 %v141
    %vm148 = vweird.f32 %v142
    %vm149 = vmor %vm147, %vm148
    %v150 = vsel %vm149, %v142, %v146
    %v151 = vand.u32 2147483647, %v141
    %vm152 = vcmp.eq.f32.partialorder %v151, 8.507059e+37
    %v153 = vand.u32 %v141, 2147483648
    %v154 = vor.u32 1.1754944e-38, %v153
    %v155 = vsel %vm152, %v154, %v150
    %v156 = vmul.f32 1.0, %v155
    %157 = vst [vmem:[#allocation8] sm:$0xff] %v156
    // Predicated region
    $region34: #{tpu_custom_call.1} parent=1 // pred_check
      _
    $region35: #{tpu_custom_call.1} parent=1 // pred_check_branch
      %159 = sbr.rel (0) target = $region37
    $region36: #{tpu_custom_call.1} parent=1 // pred_region
      %161 = vsyncadd [#allocation4], 0
      %s163 = sshll.u32 [#allocation8], 4
      %s164 = int_to_ptr.vmem [resolvable:$true] %s163
      %s165 = sshll.u32 %s5, 4
      %s166 = int_to_ptr.hbm [resolvable:$true] %s165
      %168 = dma.vmem_to_hbm [thread:$0]  %s164, 128, %s166, [#allocation4]
    $region37: #{tpu_custom_call.1} parent=1 // pred_fallthru
      _
    // Predicated region
    $region38: #{tpu_custom_call.1} parent=1 // pred_check
      _
    $region39: #{tpu_custom_call.1} parent=1 // pred_check_branch
      %170 = sbr.rel (0) target = $region41
    $region40: #{tpu_custom_call.1} parent=1 // pred_region
      %172 = dma.done [#allocation4], 128
    $region41: #{tpu_custom_call.1} parent=1 // pred_fallthru
      _
    %173 = vsyncpa [#allocation3], 1
    %174 = vsyncpa [#allocation6], 1
    %175 = vsyncpa [#allocation4], 1

</llo_original>
